<compile_context>
chip_gen: v5e
topology: v5e:2x2
jax: 0.10.0
libtpu: 0.0.40
codegen_flags: <defaults>
</compile_context>

<pallas_src>
import numpy as np
import jax
import jax.numpy as jnp
from jax.experimental import pallas as pl
from jax.experimental.pallas import tpu as pltpu


def _make_concat_kernel(channel_sizes):
    """Kernel that copies each input block into its static channel slice."""
    offsets = np.concatenate([[0], np.cumsum(channel_sizes)]).astype(int).tolist()

    def kernel(*refs):
        in_refs, o_ref = refs[:-1], refs[-1]
        for r, lo, hi in zip(in_refs, offsets[:-1], offsets[1:]):
            # Static channel slice on the sublane axis; lanes are fully dense.
            o_ref[:, lo:hi, :] = r[...]

    return kernel


def _pick_lane_tile(tail, ctot, dtype_bytes):
    """Largest lane tile (multiple of 128, dividing `tail`) within VMEM budget."""
    vmem_budget = 24 * 1024 * 1024                 # headroom under 32 MiB scoped limit
    per_lane = 2 * ctot * dtype_bytes * 2          # (inputs + output) x double-buffer
    max_lanes = max(128, int(vmem_budget // per_lane) // 128 * 128)
    if tail <= max_lanes or tail % 128 != 0:
        return tail                                # full extent is always a legal block
    t = min(max_lanes, tail) // 128 * 128
    while t >= 128 and tail % t != 0:
        t -= 128
    return t if t >= 128 else tail


def concat_pallas(xs, dim=1):
    """torch.cat(xs, dim) equivalent, implemented as tiled Pallas copies."""
    xs = [jnp.asarray(x) for x in xs]
    dtype = xs[0].dtype
    assert all(x.dtype == dtype for x in xs), "all inputs must share a dtype"
    rank = xs[0].ndim
    d = dim % rank

    lead = int(np.prod(xs[0].shape[:d], dtype=np.int64)) if d > 0 else 1
    tail = int(np.prod(xs[0].shape[d + 1:], dtype=np.int64)) if d + 1 < rank else 1
    channels = [int(x.shape[d]) for x in xs]
    ctot = int(sum(channels))

    # Canonical 3-D views: (lead, C_i, tail). Pure trailing/leading reshapes.
    xs3 = [x.reshape(lead, c, tail) for x, c in zip(xs, channels)]

    dtype_bytes = jnp.dtype(dtype).itemsize
    tile = _pick_lane_tile(tail, ctot, dtype_bytes)
    n_tiles = tail // tile
    grid = (lead, n_tiles)

    in_specs = [
        pl.BlockSpec((1, c, tile), lambda b, j: (b, 0, j)) for c in channels
    ]
    out_specs = pl.BlockSpec((1, ctot, tile), lambda b, j: (b, 0, j))

    total_bytes = sum(int(x.size) * dtype_bytes for x in xs)
    cost = pl.CostEstimate(flops=0, transcendentals=0,
                           bytes_accessed=2 * total_bytes)  # read + write

    out3 = pl.pallas_call(
        _make_concat_kernel(channels),
        out_shape=jax.ShapeDtypeStruct((lead, ctot, tail), dtype),
        grid=grid,
        in_specs=in_specs,
        out_specs=out_specs,
        compiler_params=pltpu.CompilerParams(
            dimension_semantics=("parallel", "parallel")),
        cost_estimate=cost,
    )(*xs3)

    out_shape = xs[0].shape[:d] + (ctot,) + xs[0].shape[d + 1:]
    return out3.reshape(out_shape)


# ----------------------------------------------------------------------------
# Main: small deterministic check against jnp.concatenate
# ----------------------------------------------------------------------------
if __name__ == "__main__":
    key = jax.random.PRNGKey(0)
    k1, k2 = jax.random.split(key)

    # Typical Concat(dimension=1) use: channel concat of NCHW feature maps.
    x0 = jax.random.normal(k1, (2, 4, 16, 16), jnp.float32)
    x1 = jax.random.normal(k2, (2, 8, 16, 16), jnp.float32)

    out = jax.block_until_ready(concat_pallas([x0, x1], dim=1))
    ref = jax.block_until_ready(jnp.concatenate([x0, x1], axis=1))

    assert out.shape == (2, 12, 16, 16), out.shape
    np.testing.assert_array_equal(np.asarray(out), np.asarray(ref))

    print("KERNEL_OK")
</pallas_src>

<mosaic_0001>
module attributes {stable_mosaic.version = 11 : i64} {
  func.func @kernel(%arg0: i32, %arg1: i32, %arg2: memref<1x4x256xf32, #tpu.memory_space<vmem>>, %arg3: memref<1x8x256xf32, #tpu.memory_space<vmem>>, %arg4: memref<1x12x256xf32, #tpu.memory_space<vmem>>) attributes {dimension_semantics = [#tpu.dimension_semantics<parallel>, #tpu.dimension_semantics<parallel>], iteration_bounds = array<i64: 2, 1>, scalar_prefetch = 0 : i64, scratch_operands = 0 : i64, tpu.core_type = #tpu.core_type<tc>, window_params = [{transform_indices = @transform_0, window_bounds = array<i64: 1, 4, 256>}, {transform_indices = @transform_1, window_bounds = array<i64: 1, 8, 256>}, {transform_indices = @transform_2, window_bounds = array<i64: 1, 12, 256>}]} {
    %c0 = arith.constant 0 : index
    %c0_0 = arith.constant 0 : index
    %c0_1 = arith.constant 0 : index
    %0 = vector.load %arg2[%c0, %c0_0, %c0_1] : memref<1x4x256xf32, #tpu.memory_space<vmem>>, vector<1x4x256xf32>
    %c0_2 = arith.constant 0 : index
    %c0_3 = arith.constant 0 : index
    %c0_4 = arith.constant 0 : index
    %1 = vector.load %arg4[%c0_2, %c0_3, %c0_4] : memref<1x12x256xf32, #tpu.memory_space<vmem>>, vector<1x4x256xf32>
    tpu.vector_store %arg4[%c0_2, %c0_3, %c0_4], %0 {strides = array<i32>} : memref<1x12x256xf32, #tpu.memory_space<vmem>>, vector<1x4x256xf32>,
    %c0_5 = arith.constant 0 : index
    %c0_6 = arith.constant 0 : index
    %c0_7 = arith.constant 0 : index
    %2 = vector.load %arg3[%c0_5, %c0_6, %c0_7] : memref<1x8x256xf32, #tpu.memory_space<vmem>>, vector<1x8x256xf32>
    %c0_8 = arith.constant 0 : index
    %c4 = arith.constant 4 : index
    %c0_9 = arith.constant 0 : index
    %3 = vector.load %arg4[%c0_8, %c4, %c0_9] : memref<1x12x256xf32, #tpu.memory_space<vmem>>, vector<1x8x256xf32>
    tpu.vector_store %arg4[%c0_8, %c4, %c0_9], %2 {strides = array<i32>} : memref<1x12x256xf32, #tpu.memory_space<vmem>>, vector<1x8x256xf32>,
    return
  }
  func.func @transform_0(%arg0: i32, %arg1: i32) -> (i32, i32, i32) {
    %c0_i32 = arith.constant 0 : i32
    %c0_i32_0 = arith.constant 0 : i32
    return %arg0, %c0_i32, %arg1 : i32, i32, i32
  }
  func.func @transform_1(%arg0: i32, %arg1: i32) -> (i32, i32, i32) {
    %c0_i32 = arith.constant 0 : i32
    %c0_i32_0 = arith.constant 0 : i32
    return %arg0, %c0_i32, %arg1 : i32, i32, i32
  }
  func.func @transform_2(%arg0: i32, %arg1: i32) -> (i32, i32, i32) {
    %c0_i32 = arith.constant 0 : i32
    %c0_i32_0 = arith.constant 0 : i32
    return %arg0, %c0_i32, %arg1 : i32, i32, i32
  }
}

</mosaic_0001>

<llo_original>
// kernel: tpu_custom_call.1
$region0: #{tpu_custom_call.1}
  #allocation0 [shape = 'u32[]', space=smem, size = 0x4, offset = 0x4, fixed_abs, tag = 'smem constant byte address 0x4 - core index']
  #allocation1 [shape = 'u32[72,128]{1,0:T(1,128)}', space=vmem, size = 0x9000, scoped, tag = 'internal scratch']
  %s0 = inlined_call_operand.hbm [shape: f32[2,4,256], index: 0, kind: input, shape index: {}]
  %s1 = inlined_call_operand.hbm [shape: f32[2,8,256], index: 1, kind: input, shape index: {}]
  %s2 = inlined_call_operand.vmem [shape: f32[2,12,256], index: 2, kind: output, shape index: {}]
  %s3 = sld [smem:[#allocation0]]
  $region49: #{tpu_custom_call.1} parent=0
    _
  %s5 = ssub.s32 1, %s3
  %s6 = scalar_select 0, %s5, %s3
  $region1: #{tpu_custom_call.1} parent=0
    #allocation2 [shape = 'u8[8192]{0}', space=vmem, size = 0x2000, scoped, tag = 'input window, operand 0']
    #allocation3 [shape = 's32[2]{0}', space=sflag, size = 0x8, scoped, tag = 'scoped memory for tpu_custom_call.1']
    #allocation4 [shape = 'u8[16384]{0}', space=vmem, size = 0x4000, scoped, tag = 'input window, operand 1']
    #allocation5 [shape = 's32[2]{0}', space=sflag, size = 0x8, scoped, tag = 'scoped memory for tpu_custom_call.1']
    %7 = vsyncpa [#allocation3], 0
    %s8 = scalar_lea.sflag [#allocation3], 1
    %9 = vsyncpa %s8, 0
    %10 = vsyncpa [#allocation5], 0
    %s11 = scalar_lea.sflag [#allocation5], 1
    %12 = vsyncpa %s11, 0
    loop: start=0, step=1, limit=4
    $region2: #{tpu_custom_call.1} parent=1 // loop_pre_header
      _
    $region3: #{tpu_custom_call.1} parent=1 // loop_header
      %s14 = sphi 0, %s18
      %p15 = scmp.ge.s32.totalorder %s14, 4
      %s21 = sphi 0, %s33
      %s22 = sphi 0, %s29
      %s23 = sphi 0, %s21
      %s24 = sphi 0, %s22
      %s25 = sphi 0, %s23
      %s26 = sphi 0, %s24
      %s38 = sphi 0, %s40
      %s41 = sphi 0, %s38
      %s42 = sphi 0, %s41
      %s58 = sphi 0, %s42
      %s66 = sphi 0, %s68
      %s69 = sphi 0, %s66
      %s70 = sphi 0, %s69
      %s86 = sphi 0, %s70
      %s94 = sphi 0, %s96
      %s97 = sphi 0, %s94
      %s98 = sphi 0, %s97
      %s114 = sphi 0, %s98
    $region4: #{tpu_custom_call.1} parent=1 // loop_header_branch
      %17 = sbr.rel (%p15) target = $region8
    $region5: #{tpu_custom_call.1} parent=1 // loop_body
      %s19 = ssub.s32 %s14, 1
      %s20 = ssub.s32 %s14, 2
      %s27 = sadd.s32 1, %s22
      %p28 = scmp.ge.s32.totalorder %s27, 1
      %s29 = scalar_select %p28, 0, %s27
      %s30 = sadd.s32 1, %s21
      %s31 = scalar_select %p28, %s30, %s21
      %p32 = scmp.ge.s32.totalorder %s31, 2
      %s33 = scalar_select %p32, 0, %s31
      %s34 = ssub.s32 %s21, %s33
      %s35 = ssub.s32 %s22, %s29
      %s36 = sor.u32 %s34, %s35
      %p37 = scmp.eq.s32.totalorder %s36, 0
      %s39 = sadd.s32 %s38, 1
      %s40 = scalar_select %p37, %s38, %s39
      %p43 = pneg %p37
      %p44 = scmp.eq.s32.totalorder %s14, 1
      %p45 = por %p43, %p44
      %p46 = scmp.ne.s32.totalorder %s38, %s41
      %p47 = scmp.eq.s32.totalorder %s14, 0
      %p48 = por %p46, %p47
      %p49 = scmp.ne.s32.totalorder %s38, %s41
      %p50 = scmp.eq.s32.totalorder %s19, 1
      %p51 = por %p49, %p50
      %p52 = scmp.ne.s32.totalorder %s41, %s42
      %p53 = scmp.eq.s32.totalorder %s19, 0
      %p54 = por %p52, %p53
      %p55 = scmp.ne.s32.totalorder %s41, %s42
      %p56 = scmp.eq.s32.totalorder %s20, 1
      %p57 = por %p55, %p56
      %p59 = scmp.ne.s32.totalorder %s42, %s58
      %p60 = scmp.eq.s32.totalorder %s20, 0
      %p61 = por %p59, %p60
      %s62 = ssub.s32 %s21, %s33
      %s63 = ssub.s32 %s22, %s29
      %s64 = sor.u32 %s62, %s63
      %p65 = scmp.eq.s32.totalorder %s64, 0
      %s67 = sadd.s32 %s66, 1
      %s68 = scalar_select %p65, %s66, %s67
      %p71 = pneg %p65
      %p72 = scmp.eq.s32.totalorder %s14, 1
      %p73 = por %p71, %p72
      %p74 = scmp.ne.s32.totalorder %s66, %s69
      %p75 = scmp.eq.s32.totalorder %s14, 0
      %p76 = por %p74, %p75
      %p77 = scmp.ne.s32.totalorder %s66, %s69
      %p78 = scmp.eq.s32.totalorder %s19, 1
      %p79 = por %p77, %p78
      %p80 = scmp.ne.s32.totalorder %s69, %s70
      %p81 = scmp.eq.s32.totalorder %s19, 0
      %p82 = por %p80, %p81
      %p83 = scmp.ne.s32.totalorder %s69, %s70
      %p84 = scmp.eq.s32.totalorder %s20, 1
      %p85 = por %p83, %p84
      %p87 = scmp.ne.s32.totalorder %s70, %s86
      %p88 = scmp.eq.s32.totalorder %s20, 0
      %p89 = por %p87, %p88
      %s90 = ssub.s32 %s21, %s33
      %s91 = ssub.s32 %s22, %s29
      %s92 = sor.u32 %s90, %s91
      %p93 = scmp.eq.s32.totalorder %s92, 0
      %s95 = sadd.s32 %s94, 1
      %s96 = scalar_select %p93, %s94, %s95
      %p99 = pneg %p93
      %p100 = scmp.eq.s32.totalorder %s14, 1
      %p101 = por %p99, %p100
      %p102 = scmp.ne.s32.totalorder %s94, %s97
      %p103 = scmp.eq.s32.totalorder %s14, 0
      %p104 = por %p102, %p103
      %p105 = scmp.ne.s32.totalorder %s94, %s97
      %p106 = scmp.eq.s32.totalorder %s19, 1
      %p107 = por %p105, %p106
      %p108 = scmp.ne.s32.totalorder %s97, %s98
      %p109 = scmp.eq.s32.totalorder %s19, 0
      %p110 = por %p108, %p109
      %p111 = scmp.ne.s32.totalorder %s97, %s98
      %p112 = scmp.eq.s32.totalorder %s20, 1
      %p113 = por %p111, %p112
      %p115 = scmp.ne.s32.totalorder %s98, %s114
      %p116 = scmp.eq.s32.totalorder %s20, 0
      %p117 = por %p115, %p116
      %p118 = scmp.le.s32.totalorder 1, %s14
      %p119 = scmp.lt.s32.totalorder %s14, 3
      %p120 = pnand %p118, %p119
      %p121 = pneg %p120
      // Predicated region
      $region9: #{tpu_custom_call.1} parent=5 // pred_check
        _
      $region10: #{tpu_custom_call.1} parent=5 // pred_check_branch
        %123 = sbr.rel (%p120) target = $region12
      $region11: #{tpu_custom_call.1} parent=5 // pred_region
        %s124 = ssub.s32 %s14, 1
      $region12: #{tpu_custom_call.1} parent=5 // pred_fallthru
        _
      %p125 = scmp.lt.s32.totalorder %s14, 2
      // Predicated region
      $region13: #{tpu_custom_call.1} parent=5 // pred_check
        %p126 = pneg %p125
      $region14: #{tpu_custom_call.1} parent=5 // pred_check_branch
        %128 = sbr.rel (%p126) target = $region16
      $region15: #{tpu_custom_call.1} parent=5 // pred_region
        // Predicated region
        $region17: #{tpu_custom_call.1} parent=15 // pred_check
          %p129 = pneg %p48
        $region18: #{tpu_custom_call.1} parent=15 // pred_check_branch
          %131 = sbr.rel (%p129) target = $region20
        $region19: #{tpu_custom_call.1} parent=15 // pred_region
          %s132 = sand.u32 %s38, 1
          %s133 = scalar_lea.sflag [#allocation3], %s132
          %s134 = sand.u32 %s38, 1
          %s135 = smul.addr %s134, 8
          %s136 = scalar_lea.vmem [#allocation2], %s135
          %s137 = smul.u32 2, %s22
          %139 = vsyncadd %s133, 0
          %s140 = smul.addr %s21, 2
          %s141 = sadd.s32 %s137, %s140
          %s142 = smul.addr %s141, 4
          %s143 = scalar_lea.hbm %s0, %s142
          %s145 = sshll.u32 %s143, 4
          %s146 = int_to_ptr.hbm [resolvable:$true] %s145
          %s147 = sshll.u32 %s136, 4
          %s148 = int_to_ptr.vmem [resolvable:$true] %s147
          %150 = dma.hbm_to_vmem [thread:$0]  %s146, 128, %s148, %s133
        $region20: #{tpu_custom_call.1} parent=15 // pred_fallthru
          _
        // Predicated region
        $region21: #{tpu_custom_call.1} parent=15 // pred_check
          %p151 = pneg %p76
        $region22: #{tpu_custom_call.1} parent=15 // pred_check_branch
          %153 = sbr.rel (%p151) target = $region24
        $region23: #{tpu_custom_call.1} parent=15 // pred_region
          %s154 = sand.u32 %s66, 1
          %s155 = scalar_lea.sflag [#allocation5], %s154
          %s156 = sand.u32 %s66, 1
          %s157 = smul.addr %s156, 16
          %s158 = scalar_lea.vmem [#allocation4], %s157
          %s159 = smul.u32 2, %s22
          %161 = vsyncadd %s155, 0
          %s162 = smul.addr %s21, 2
          %s163 = sadd.s32 %s159, %s162
          %s164 = smul.addr %s163, 8
          %s165 = scalar_lea.hbm %s1, %s164
          %s167 = sshll.u32 %s165, 4
          %s168 = int_to_ptr.hbm [resolvable:$true] %s167
          %s169 = sshll.u32 %s158, 4
          %s170 = int_to_ptr.vmem [resolvable:$true] %s169
          %172 = dma.hbm_to_vmem [thread:$0]  %s168, 256, %s170, %s155
        $region24: #{tpu_custom_call.1} parent=15 // pred_fallthru
          _
      $region16: #{tpu_custom_call.1} parent=5 // pred_fallthru
        _
      %p173 = scmp.le.s32.totalorder 1, %s14
      %p174 = scmp.lt.s32.totalorder %s14, 3
      %p175 = pnand %p173, %p174
      %p176 = pneg %p175
      // Predicated region
      $region25: #{tpu_custom_call.1} parent=5 // pred_check
        _
      $region26: #{tpu_custom_call.1} parent=5 // pred_check_branch
        %178 = sbr.rel (%p175) target = $region28
      $region27: #{tpu_custom_call.1} parent=5 // pred_region
        %s179 = ssub.s32 %s14, 1
        %s180 = sand.u32 %s41, 1
        %s181 = scalar_lea.sflag [#allocation3], %s180
        %s182 = sand.u32 %s41, 1
        %s183 = smul.addr %s182, 8
        %s184 = scalar_lea.vmem [#allocation2], %s183
        // Predicated region
        $region29: #{tpu_custom_call.1} parent=27 // pred_check
          %p185 = pneg %p54
        $region30: #{tpu_custom_call.1} parent=27 // pred_check_branch
          %187 = sbr.rel (%p185) target = $region32
        $region31: #{tpu_custom_call.1} parent=27 // pred_region
          %189 = dma.done %s181, 128
        $region32: #{tpu_custom_call.1} parent=27 // pred_fallthru
          _
        %s190 = sand.u32 %s69, 1
        %s191 = scalar_lea.sflag [#allocation5], %s190
        %s192 = sand.u32 %s69, 1
        %s193 = smul.addr %s192, 16
        %s194 = scalar_lea.vmem [#allocation4], %s193
        // Predicated region
        $region33: #{tpu_custom_call.1} parent=27 // pred_check
          %p195 = pneg %p82
        $region34: #{tpu_custom_call.1} parent=27 // pred_check_branch
          %197 = sbr.rel (%p195) target = $region36
        $region35: #{tpu_custom_call.1} parent=27 // pred_region
          %199 = dma.done %s191, 256
        $region36: #{tpu_custom_call.1} parent=27 // pred_fallthru
          _
        %s200 = sand.u32 %s41, 1
        %s201 = scalar_lea.sflag [#allocation3], %s200
        %s202 = sand.u32 %s41, 1
        %s203 = smul.addr %s202, 8
        %s204 = scalar_lea.vmem [#allocation2], %s203
        %p205 = pneg %p54
        %p206 = pneg %p51
        %s207 = sand.u32 %s69, 1
        %s208 = scalar_lea.sflag [#allocation5], %s207
        %s209 = sand.u32 %s69, 1
        %s210 = smul.addr %s209, 16
        %s211 = scalar_lea.vmem [#allocation4], %s210
        %p212 = pneg %p82
        %p213 = pneg %p79
        %p214 = pneg %p110
        %p215 = pneg %p107
        %s216 = smul.u32 2, %s24
        %p217 = scmp.lt.s32.totalorder %s23, 1
        %s218 = scalar_select %p217, %s23, 1
        %p219 = scmp.lt.s32.totalorder %s216, 1
        %s220 = scalar_select %p219, %s216, 1
        %s221 = smul.addr %s218, 4
        %s222 = sadd.s32 %s220, %s221
        %s223 = smul.addr %s222, 8
        %s224 = scalar_lea.vmem %s2, %s223
        %s225 = smul.u32 2, %s24
        %s226 = smul.u32 2, %s24
        %s227 = smul.u32 2, %s24
        %p228 = scmp.lt.s32.totalorder %s23, 1
        %s229 = scalar_select %p228, %s23, 1
        %p230 = scmp.lt.s32.totalorder %s227, 1
        %s231 = scalar_select %p230, %s227, 1
        %s232 = smul.addr %s229, 4
        %s233 = sadd.s32 %s231, %s232
        %s234 = smul.addr %s233, 8
        %s235 = scalar_lea.vmem %s2, %s234
        %s236 = smul.u32 2, %s24
        %v237 = vld [vmem:[%s184] sm:$0xff]
        %239 = vst [vmem:[#allocation1] ss:$2 sm:$0xff] %v237
        %v240 = vld.sshfl [vmem:[#allocation1] sm:$0xff pattern:$0x75316420]
        %v241 = vld.sshfl [vmem:[#allocation1 + $0x8] sm:$0xff pattern:$0x75316420]
        %244 = vst [vmem:[%s235] sm:$0xf] %v240
        %245 = vst [vmem:[%s235 + $0x8] sm:$0xf] %v241
        %v246 = vld [vmem:[%s194] sm:$0xff]
        %v247 = vld [vmem:[%s194 + $0x8] sm:$0xff]
        %v250 = vrot.slane %v246, 4
        %v251 = vrot.slane %v247, 4
        %254 = vst [vmem:[%s235] sm:$0xf0] %v250
        %255 = vst [vmem:[%s235 + $0x8] sm:$0xf0] %v251
        %256 = vst [vmem:[%s235 + $0x10] sm:$0xf] %v250
        %257 = vst [vmem:[%s235 + $0x18] sm:$0xf] %v251
        %s258 = smul.u32 2, %s24
        %p259 = scmp.lt.s32.totalorder %s23, 1
        %s260 = scalar_select %p259, %s23, 1
        %p261 = scmp.lt.s32.totalorder %s258, 1
        %s262 = scalar_select %p261, %s258, 1
        %s263 = smul.addr %s260, 4
        %s264 = sadd.s32 %s262, %s263
        %s265 = smul.addr %s264, 8
        %s266 = scalar_lea.vmem %s2, %s265
        // Predicated region
        $region37: #{tpu_custom_call.1} parent=27 // pred_check
          %p267 = pneg %p107
        $region38: #{tpu_custom_call.1} parent=27 // pred_check_branch
          %269 = sbr.rel (%p267) target = $region40
        $region39: #{tpu_custom_call.1} parent=27 // pred_region
          %s270 = smul.u32 2, %s24
        $region40: #{tpu_custom_call.1} parent=27 // pred_fallthru
          _
      $region28: #{tpu_custom_call.1} parent=5 // pred_fallthru
        _
      %p271 = scmp.le.s32.totalorder 2, %s14
      // Predicated region
      $region41: #{tpu_custom_call.1} parent=5 // pred_check
        %p272 = pneg %p271
      $region42: #{tpu_custom_call.1} parent=5 // pred_check_branch
        %274 = sbr.rel (%p272) target = $region44
      $region43: #{tpu_custom_call.1} parent=5 // pred_region
        %s275 = ssub.s32 %s14, 2
        // Predicated region
        $region45: #{tpu_custom_call.1} parent=43 // pred_check
          %p276 = pneg %p113
        $region46: #{tpu_custom_call.1} parent=43 // pred_check_branch
          %278 = sbr.rel (%p276) target = $region48
        $region47: #{tpu_custom_call.1} parent=43 // pred_region
          %s279 = smul.u32 2, %s26
          %p280 = scmp.lt.s32.totalorder %s25, 1
          %s281 = scalar_select %p280, %s25, 1
          %p282 = scmp.lt.s32.totalorder %s279, 1
          %s283 = scalar_select %p282, %s279, 1
          %s284 = smul.addr %s281, 4
          %s285 = sadd.s32 %s283, %s284
          %s286 = smul.addr %s285, 8
          %s287 = scalar_lea.vmem %s2, %s286
        $region48: #{tpu_custom_call.1} parent=43 // pred_fallthru
          _
      $region44: #{tpu_custom_call.1} parent=5 // pred_fallthru
        _
    $region6: #{tpu_custom_call.1} parent=1 // loop_footer
      %s18 = sadd.s32 1, %s14
    $region7: #{tpu_custom_call.1} parent=1 // loop_footer_branch
      %13 = sbr.rel target = $region3
    $region8: #{tpu_custom_call.1} parent=1 // loop_exit
      _
    %288 = vsyncpa [#allocation3], 1
    %s289 = scalar_lea.sflag [#allocation3], 1
    %290 = vsyncpa %s289, 1
    %291 = vsyncpa [#allocation5], 1
    %s292 = scalar_lea.sflag [#allocation5], 1
    %293 = vsyncpa %s292, 1

</llo_original>
